<compile_context>
chip_gen: v7x
topology: tpu7x:2x2x1
jax: 0.10.0
libtpu: 0.0.40
codegen_flags: <defaults>
</compile_context>

<pallas_src>
import jax
import jax.numpy as jnp
from jax import lax
from jax.experimental import pallas as pl
from jax.experimental.pallas import tpu as pltpu


def _round_up(n, m):
    return ((n + m - 1) // m) * m


def treatment_mlp_kernel(x_ref, t_ref, w1x_ref, w1t_ref, b1_ref, w2_ref,
                         b2_ref, out_ref):
    # x_ref : (TB, D)        streamed (f32 or bf16)
    # t_ref : (TB, 1) int32  streamed treatment index
    # w1x_ref: (D, H)        resident (same dtype family as x)
    # w1t_ref: (T, H)        resident
    # b1_ref : (1, H) f32    resident
    # w2_ref : (1, H) f32    resident
    # b2_ref : (1, 1) f32    SMEM scalar
    # out_ref: (1, 1, TB) f32 lane-dense output row
    x = x_ref[...]
    tb = x.shape[0]
    n_treat = w1t_ref.shape[0]

    # First projection, split so the (B, D+T) concat never exists in HBM.
    h = jnp.dot(x, w1x_ref[...], preferred_element_type=jnp.float32)

    # Rebuild the one-hot in VMEM from the streamed index and feed the MXU:
    # (TB, T) = (iota == idx); this replaces 16 B/row of HBM one-hot traffic.
    onehot = (lax.broadcasted_iota(jnp.int32, (tb, n_treat), 1)
              == t_ref[...]).astype(w1t_ref.dtype)
    h = h + jnp.dot(onehot, w1t_ref[...], preferred_element_type=jnp.float32)

    h = jnp.maximum(h + b1_ref[...], 0.0)                       # (TB, H) f32

    # Second projection directly in lane-dense layout, no explicit h.T:
    #   (1, H) x (TB, H) contracting H  ->  (1, TB)
    o = lax.dot_general(w2_ref[...], h,
                        dimension_numbers=(((1,), (1,)), ((), ())),
                        preferred_element_type=jnp.float32)
    out_ref[0] = o + b2_ref[0, 0]                               # (1, TB)


def treatment_mlp_forward(x, t, w1, b1, w2, b2, *, block_b=8192,
                          vmem_limit_bytes=None):
    """TreatmentMLP forward.

    x : (B, D) f32 or bf16 (supply bf16 upstream to halve HBM read bytes).
    t : either (B,) / (B,1) integer treatment indices (fast path, fewest
        streamed bytes) or (B, T) one-hot (module-exact signature; converted
        to indices with one extra small argmax pass).
    w1: (D+T, H) (same dtype family as x), b1: (H,), w2: (H, 1), b2: (1,)
    Returns (B,) float32.
    """
    B, D = x.shape
    H = w1.shape[1]
    T = w1.shape[0] - D

    # Treatment -> (B, 1) int32 index stream.
    if t.ndim == 2 and t.shape[1] > 1:
        assert t.shape[1] == T, "one-hot width must match w1.shape[0] - D"
        t_idx = jnp.argmax(t, axis=1).astype(jnp.int32)
    else:
        t_idx = t.reshape(-1).astype(jnp.int32)
    t_idx = t_idx.reshape(B, 1)

    # Split W1 so no (B, D+T) concat is ever materialized in HBM.
    w1x = w1[:D, :]
    w1t = w1[D:, :]
    b1_2d = jnp.asarray(b1, jnp.float32).reshape(1, H)
    w2_row = jnp.asarray(w2, jnp.float32).reshape(1, H)
    b2_2d = jnp.asarray(b2, jnp.float32).reshape(1, 1)

    # Batch tile: multiple of 128 (lane-dense output), big enough to amortize
    # per-grid-step overhead, but capped so B > 128 always gives >= 2 tiles
    # (so the "parallel" axis splits across both TCs on v7x).
    tb = min(int(block_b), _round_up(max(1, (B + 1) // 2), 128))
    tb = max(128, _round_up(tb, 128))
    num_tiles = pl.cdiv(B, tb)

    # VMEM budget using lane-padded block sizes (D and the index column pad to
    # 128 lanes; streamed blocks are double-buffered), with headroom.
    in_item = jnp.dtype(x.dtype).itemsize
    vmem_est = (
        2 * tb * _round_up(D, 128) * in_item          # x double buffer
        + 2 * tb * 128 * 4                            # t_idx double buffer
        + 4 * tb * _round_up(H, 128) * 4              # h / one-hot / temps
        + 2 * _round_up(tb, 128) * 8 * 4              # output blocks
        + 2 * (D + T + 2) * _round_up(H, 128) * 4     # resident weights/bias
    )
    if vmem_limit_bytes is None:
        vmem_limit_bytes = max(32 << 20, min(int(1.5 * vmem_est) + (4 << 20),
                                             128 << 20))

    cost = pl.CostEstimate(
        flops=2 * B * H * (D + T + 1),
        transcendentals=0,
        bytes_accessed=(B * D * in_item + B * 4 + B * 4
                        + (D + T) * H * jnp.dtype(w1.dtype).itemsize
                        + (2 * H + 1) * 4),
    )

    # No jnp.pad of the ragged tail: Pallas clips the last input block; the
    # undefined tail rows only affect output lanes dropped by the [:B] slice.
    out = pl.pallas_call(
        treatment_mlp_kernel,
        out_shape=jax.ShapeDtypeStruct((num_tiles, 1, tb), jnp.float32),
        grid=(num_tiles,),
        in_specs=[
            pl.BlockSpec((tb, D), lambda i: (i, 0)),        # x     : streamed
            pl.BlockSpec((tb, 1), lambda i: (i, 0)),        # t_idx : streamed
            pl.BlockSpec((D, H), lambda i: (0, 0)),         # W1x   : resident
            pl.BlockSpec((T, H), lambda i: (0, 0)),         # W1t   : resident
            pl.BlockSpec((1, H), lambda i: (0, 0)),         # b1    : resident
            pl.BlockSpec((1, H), lambda i: (0, 0)),         # w2    : resident
            pl.BlockSpec(memory_space=pltpu.MemorySpace.SMEM),  # b2 scalar
        ],
        out_specs=pl.BlockSpec((1, 1, tb), lambda i: (i, 0, 0)),
        compiler_params=pltpu.CompilerParams(
            dimension_semantics=("parallel",),
            vmem_limit_bytes=vmem_limit_bytes),
        cost_estimate=cost,
    )(x, t_idx, w1x, w1t, b1_2d, w2_row, b2_2d)

    # Glue: flatten the lane-dense slab back to (B,) (replaces .squeeze(-1)).
    return out.reshape(-1)[:B]


def init_params(key, input_dim, num_treatments, hidden_dim=32):
    """Deterministic init mimicking nn.Linear's U(-1/sqrt(fan_in), +) scheme.
    Weights stored as (in_features, out_features)."""
    k1, k2, k3, k4 = jax.random.split(key, 4)
    fan1 = input_dim + num_treatments
    lim1 = 1.0 / jnp.sqrt(jnp.float32(fan1))
    w1 = jax.random.uniform(k1, (fan1, hidden_dim), jnp.float32, -lim1, lim1)
    b1 = jax.random.uniform(k2, (hidden_dim,), jnp.float32, -lim1, lim1)
    lim2 = 1.0 / jnp.sqrt(jnp.float32(hidden_dim))
    w2 = jax.random.uniform(k3, (hidden_dim, 1), jnp.float32, -lim2, lim2)
    b2 = jax.random.uniform(k4, (1,), jnp.float32, -lim2, lim2)
    return w1, b1, w2, b2


if __name__ == "__main__":
    key = jax.random.PRNGKey(0)
    kx, kt, kp = jax.random.split(key, 3)

    B, D, T, H = 8, 16, 4, 32
    x = jax.random.normal(kx, (B, D), jnp.float32)
    t_idx = jax.random.randint(kt, (B,), 0, T)
    t_onehot = jax.nn.one_hot(t_idx, T, dtype=jnp.float32)
    w1, b1, w2, b2 = init_params(kp, D, T, H)

    def ref_forward(xv, tv, w1v):
        inputs = jnp.concatenate([xv, tv], axis=1)
        return (jnp.maximum(inputs @ w1v + b1, 0.0) @ w2 + b2)[:, 0]

    # 1) Module-exact one-hot signature, f32 (single 128-row tile).
    out = jax.block_until_ready(
        treatment_mlp_forward(x, t_onehot, w1, b1, w2, b2))
    ref = ref_forward(x, t_onehot, w1)
    assert out.shape == (B,)
    assert jnp.allclose(out, ref, atol=1e-4, rtol=1e-4)

    # 2) Index fast path, multi-tile + ragged tail (B=300 -> 2 tiles of 256,
    #    last block clipped by Pallas, no wrapper-side padding).
    B2 = 300
    kx2, kt2 = jax.random.split(jax.random.PRNGKey(1))
    x2 = jax.random.normal(kx2, (B2, D), jnp.float32)
    ti2 = jax.random.randint(kt2, (B2,), 0, T)
    out2 = jax.block_until_ready(
        treatment_mlp_forward(x2, ti2, w1, b1, w2, b2))
    ref2 = ref_forward(x2, jax.nn.one_hot(ti2, T, dtype=jnp.float32), w1)
    assert out2.shape == (B2,)
    assert jnp.allclose(out2, ref2, atol=1e-4, rtol=1e-4)

    # 3) bf16-streamed x / W1 (halves HBM read bytes), f32 accumulation.
    xb = x.astype(jnp.bfloat16)
    w1b = w1.astype(jnp.bfloat16)
    out3 = jax.block_until_ready(
        treatment_mlp_forward(xb, t_idx, w1b, b1, w2, b2))
    ref3 = ref_forward(xb.astype(jnp.float32), t_onehot,
                       w1b.astype(jnp.float32))
    assert out3.shape == (B,)
    assert jnp.allclose(out3, ref3, atol=1e-3, rtol=1e-3)

    print("KERNEL_OK")
</pallas_src>

<mosaic_0001>
module attributes {stable_mosaic.version = 11 : i64} {
  func.func @treatment_mlp_kernel(%arg0: i32, %arg1: memref<128x16xf32, #tpu.memory_space<vmem>>, %arg2: memref<128x1xi32, #tpu.memory_space<vmem>>, %arg3: memref<16x32xf32, #tpu.memory_space<vmem>>, %arg4: memref<4x32xf32, #tpu.memory_space<vmem>>, %arg5: memref<1x32xf32, #tpu.memory_space<vmem>>, %arg6: memref<1x32xf32, #tpu.memory_space<vmem>>, %arg7: memref<1x1xf32, #tpu.memory_space<smem>>, %arg8: memref<1x1x128xf32, #tpu.memory_space<vmem>>) attributes {dimension_semantics = [#tpu.dimension_semantics<parallel>], iteration_bounds = array<i64: 1>, scalar_prefetch = 0 : i64, scratch_operands = 0 : i64, tpu.core_type = #tpu.core_type<tc>, window_params = [{transform_indices = @transform_0, window_bounds = array<i64: 128, 16>}, {transform_indices = @transform_1, window_bounds = array<i64: 128, 1>}, {pipeline_mode = #tpu.pipeline_mode<synchronous>, transform_indices = @transform_2, window_bounds = array<i64: 16, 32>}, {pipeline_mode = #tpu.pipeline_mode<synchronous>, transform_indices = @transform_3, window_bounds = array<i64: 4, 32>}, {pipeline_mode = #tpu.pipeline_mode<synchronous>, transform_indices = @transform_4, window_bounds = array<i64: 1, 32>}, {pipeline_mode = #tpu.pipeline_mode<synchronous>, transform_indices = @transform_5, window_bounds = array<i64: 1, 32>}, {transform_indices = @transform_6, window_bounds = array<i64: 1, 1>}, {transform_indices = @transform_7, window_bounds = array<i64: 1, 1, 128>}]} {
    %c0 = arith.constant 0 : index
    %c0_0 = arith.constant 0 : index
    %0 = vector.load %arg1[%c0, %c0_0] : memref<128x16xf32, #tpu.memory_space<vmem>>, vector<128x16xf32>
    %c0_1 = arith.constant 0 : index
    %c0_2 = arith.constant 0 : index
    %1 = vector.load %arg3[%c0_1, %c0_2] : memref<16x32xf32, #tpu.memory_space<vmem>>, vector<16x32xf32>
    %cst = arith.constant dense<0.000000e+00> : vector<128x32xf32>
    %2 = tpu.matmul %0, %1, %cst {dimension_numbers = #tpu.dot_dimension_numbers<[1], [0], [0], [1], [0, 0, 1, 1], [], []>} : vector<128x16xf32>, vector<16x32xf32>, vector<128x32xf32> -> vector<128x32xf32>
    %3 = tpu.iota {dimensions = array<i32: 1>} : vector<128x4xi32>
    %c0_3 = arith.constant 0 : index
    %c0_4 = arith.constant 0 : index
    %4 = vector.load %arg2[%c0_3, %c0_4] : memref<128x1xi32, #tpu.memory_space<vmem>>, vector<128x1xi32>
    %5 = vector.broadcast %4 : vector<128x1xi32> to vector<128x4xi32>
    %6 = arith.cmpi eq, %3, %5 : vector<128x4xi32>
    %7 = arith.extui %6 : vector<128x4xi1> to vector<128x4xi32>
    %8 = arith.sitofp %7 : vector<128x4xi32> to vector<128x4xf32>
    %c0_5 = arith.constant 0 : index
    %c0_6 = arith.constant 0 : index
    %9 = vector.load %arg4[%c0_5, %c0_6] : memref<4x32xf32, #tpu.memory_space<vmem>>, vector<4x32xf32>
    %cst_7 = arith.constant dense<0.000000e+00> : vector<128x32xf32>
    %10 = tpu.matmul %8, %9, %cst_7 {dimension_numbers = #tpu.dot_dimension_numbers<[1], [0], [0], [1], [0, 0, 1, 1], [], []>} : vector<128x4xf32>, vector<4x32xf32>, vector<128x32xf32> -> vector<128x32xf32>
    %11 = arith.addf %2, %10 : vector<128x32xf32>
    %c0_8 = arith.constant 0 : index
    %c0_9 = arith.constant 0 : index
    %12 = vector.load %arg5[%c0_8, %c0_9] : memref<1x32xf32, #tpu.memory_space<vmem>>, vector<1x32xf32>
    %13 = vector.broadcast %12 : vector<1x32xf32> to vector<128x32xf32>
    %14 = arith.addf %11, %13 : vector<128x32xf32>
    %cst_10 = arith.constant 0.000000e+00 : f32
    %15 = vector.broadcast %cst_10 : f32 to vector<128x32xf32>
    %16 = arith.maximumf %14, %15 : vector<128x32xf32>
    %c0_11 = arith.constant 0 : index
    %c0_12 = arith.constant 0 : index
    %17 = vector.load %arg6[%c0_11, %c0_12] : memref<1x32xf32, #tpu.memory_space<vmem>>, vector<1x32xf32>
    %cst_13 = arith.constant dense<0.000000e+00> : vector<1x128xf32>
    %18 = tpu.matmul %17, %16, %cst_13 {dimension_numbers = #tpu.dot_dimension_numbers<[1], [1], [0], [0], [0, 0, 1, 0], [], []>} : vector<1x32xf32>, vector<128x32xf32>, vector<1x128xf32> -> vector<1x128xf32>
    %c0_14 = arith.constant 0 : index
    %c0_15 = arith.constant 0 : index
    %19 = memref.load %arg7[%c0_14, %c0_15] : memref<1x1xf32, #tpu.memory_space<smem>>
    %20 = vector.broadcast %19 : f32 to vector<1x128xf32>
    %21 = arith.addf %18, %20 : vector<1x128xf32>
    %c0_16 = arith.constant 0 : index
    %c0_17 = arith.constant 0 : index
    %c0_18 = arith.constant 0 : index
    %22 = vector.load %arg8[%c0_16, %c0_17, %c0_18] : memref<1x1x128xf32, #tpu.memory_space<vmem>>, vector<1x1x128xf32>
    %23 = vector.shape_cast %22 : vector<1x1x128xf32> to vector<1x128xf32>
    %24 = vector.shape_cast %21 : vector<1x128xf32> to vector<1x1x128xf32>
    tpu.vector_store %arg8[%c0_16, %c0_17, %c0_18], %24 {strides = array<i32>} : memref<1x1x128xf32, #tpu.memory_space<vmem>>, vector<1x1x128xf32>,
    return
  }
  func.func @transform_0(%arg0: i32) -> (i32, i32) {
    %c0_i32 = arith.constant 0 : i32
    %c0_i32_0 = arith.constant 0 : i32
    return %arg0, %c0_i32 : i32, i32
  }
  func.func @transform_1(%arg0: i32) -> (i32, i32) {
    %c0_i32 = arith.constant 0 : i32
    %c0_i32_0 = arith.constant 0 : i32
    return %arg0, %c0_i32 : i32, i32
  }
  func.func @transform_2(%arg0: i32) -> (i32, i32) {
    %c0_i32 = arith.constant 0 : i32
    %c0_i32_0 = arith.constant 0 : i32
    %c0_i32_1 = arith.constant 0 : i32
    return %c0_i32, %c0_i32_0 : i32, i32
  }
  func.func @transform_3(%arg0: i32) -> (i32, i32) {
    %c0_i32 = arith.constant 0 : i32
    %c0_i32_0 = arith.constant 0 : i32
    %c0_i32_1 = arith.constant 0 : i32
    return %c0_i32, %c0_i32_0 : i32, i32
  }
  func.func @transform_4(%arg0: i32) -> (i32, i32) {
    %c0_i32 = arith.constant 0 : i32
    %c0_i32_0 = arith.constant 0 : i32
    %c0_i32_1 = arith.constant 0 : i32
    return %c0_i32, %c0_i32_0 : i32, i32
  }
  func.func @transform_5(%arg0: i32) -> (i32, i32) {
    %c0_i32 = arith.constant 0 : i32
    %c0_i32_0 = arith.constant 0 : i32
    %c0_i32_1 = arith.constant 0 : i32
    return %c0_i32, %c0_i32_0 : i32, i32
  }
  func.func @transform_6(%arg0: i32) -> (i32, i32) {
    %c0_i32 = arith.constant 0 : i32
    %c0_i32_0 = arith.constant 0 : i32
    %c0_i32_1 = arith.constant 0 : i32
    return %c0_i32, %c0_i32_0 : i32, i32
  }
  func.func @transform_7(%arg0: i32) -> (i32, i32, i32) {
    %c0_i32 = arith.constant 0 : i32
    %c0_i32_0 = arith.constant 0 : i32
    %c0_i32_1 = arith.constant 0 : i32
    return %arg0, %c0_i32, %c0_i32_0 : i32, i32, i32
  }
}

</mosaic_0001>

<llo_original>
// kernel: tpu_custom_call.1
$region0: #{tpu_custom_call.1}
  #allocation0 [shape = 'u32[]', space=smem, size = 0x4, offset = 0x4, fixed_abs, tag = 'smem constant byte address 0x4 - core index']
  #allocation1 [shape = 'u32[144,128]{1,0:T(1,128)}', space=vmem, size = 0x12000, scoped, tag = 'internal scratch']
  #allocation2 [shape = 'f32[1,1]{1,0:T(1,128)S(6)}', space=smem, size = 0x200, scoped, tag = 'scoped memory for tpu_custom_call.1']
  %s0 = inlined_call_operand.hbm [shape: f32[8,16], index: 0, kind: input, shape index: {}]
  %s1 = inlined_call_operand.vmem [shape: s32[8,1], index: 1, kind: input, shape index: {}]
  %s2 = inlined_call_operand.vmem [shape: f32[16,32], index: 2, kind: input, shape index: {}]
  %s3 = inlined_call_operand.vmem [shape: f32[4,32], index: 3, kind: input, shape index: {}]
  %s4 = inlined_call_operand.vmem [shape: f32[1,32], index: 4, kind: input, shape index: {}]
  %s5 = inlined_call_operand.vmem [shape: f32[1,32], index: 5, kind: input, shape index: {}]
  %s6 = inlined_call_operand.<no memory space> [shape: f32[1,1], index: 6, kind: input, shape index: {}]
  %s7 = inlined_call_operand.hbm [shape: f32[1,1,128], index: 7, kind: output, shape index: {}]
  %s8 = sld [smem:[#allocation0]]
  $region42: #{tpu_custom_call.1} parent=0
    _
  %s10 = ssub.s32 1, %s8
  %s11 = scalar_select 0, %s10, %s8
  %12 = sst [smem:[#allocation2]] %s6
  $region1: #{tpu_custom_call.1} parent=0
    #allocation3 [shape = 'u8[65536]{0}', space=vmem, size = 0x10000, scoped, tag = 'input window, operand 0, single buffered']
    #allocation4 [shape = 's32[1]{0}', space=sflag, size = 0x4, scoped, tag = 'scoped memory for tpu_custom_call.1']
    #allocation5 [shape = 's32[1]{0}', space=sflag, size = 0x4, scoped, tag = 'scoped memory for tpu_custom_call.1']
    #allocation6 [shape = 'u8[512]{0}', space=vmem, size = 0x400, scoped, tag = 'output window, operand 0, single buffered']
    %13 = vsyncpa [#allocation4], 0
    %14 = vsyncpa [#allocation5], 0
    // Predicated region
    $region2: #{tpu_custom_call.1} parent=1 // pred_check
      _
    $region3: #{tpu_custom_call.1} parent=1 // pred_check_branch
      %16 = sbr.rel (0) target = $region5
    $region4: #{tpu_custom_call.1} parent=1 // pred_region
      %s18 = ssub.s32 2048, 128
      %19 = vsyncadd [#allocation4], %s18
      %s20 = sshll.u32 [#allocation3], 4
      %s21 = int_to_ptr.vmem [resolvable:$true] %s20
      %26 = dma.hbm_to_vmem [thread:$0]  %s0, 128, %s21, [#allocation4], 128, 128, 8
    $region5: #{tpu_custom_call.1} parent=1 // pred_fallthru
      _
    // Predicated region
    $region6: #{tpu_custom_call.1} parent=1 // pred_check
      _
    $region7: #{tpu_custom_call.1} parent=1 // pred_check_branch
      %28 = sbr.rel (0) target = $region9
    $region8: #{tpu_custom_call.1} parent=1 // pred_region
      _
    $region9: #{tpu_custom_call.1} parent=1 // pred_fallthru
      _
    // Predicated region
    $region10: #{tpu_custom_call.1} parent=1 // pred_check
      _
    $region11: #{tpu_custom_call.1} parent=1 // pred_check_branch
      %30 = sbr.rel (0) target = $region13
    $region12: #{tpu_custom_call.1} parent=1 // pred_region
      _
    $region13: #{tpu_custom_call.1} parent=1 // pred_fallthru
      _
    // Predicated region
    $region14: #{tpu_custom_call.1} parent=1 // pred_check
      _
    $region15: #{tpu_custom_call.1} parent=1 // pred_check_branch
      %32 = sbr.rel (0) target = $region17
    $region16: #{tpu_custom_call.1} parent=1 // pred_region
      _
    $region17: #{tpu_custom_call.1} parent=1 // pred_fallthru
      _
    // Predicated region
    $region18: #{tpu_custom_call.1} parent=1 // pred_check
      _
    $region19: #{tpu_custom_call.1} parent=1 // pred_check_branch
      %34 = sbr.rel (0) target = $region21
    $region20: #{tpu_custom_call.1} parent=1 // pred_region
      _
    $region21: #{tpu_custom_call.1} parent=1 // pred_fallthru
      _
    // Predicated region
    $region22: #{tpu_custom_call.1} parent=1 // pred_check
      _
    $region23: #{tpu_custom_call.1} parent=1 // pred_check_branch
      %36 = sbr.rel (0) target = $region25
    $region24: #{tpu_custom_call.1} parent=1 // pred_region
      _
    $region25: #{tpu_custom_call.1} parent=1 // pred_fallthru
      _
    // Predicated region
    $region26: #{tpu_custom_call.1} parent=1 // pred_check
      _
    $region27: #{tpu_custom_call.1} parent=1 // pred_check_branch
      %38 = sbr.rel (0) target = $region29
    $region28: #{tpu_custom_call.1} parent=1 // pred_region
      _
    $region29: #{tpu_custom_call.1} parent=1 // pred_fallthru
      _
    // Predicated region
    $region30: #{tpu_custom_call.1} parent=1 // pred_check
      _
    $region31: #{tpu_custom_call.1} parent=1 // pred_check_branch
      %40 = sbr.rel (0) target = $region33
    $region32: #{tpu_custom_call.1} parent=1 // pred_region
      %41 = dma.done [#allocation4], 2048
    $region33: #{tpu_custom_call.1} parent=1 // pred_fallthru
      _
    %v42 = vld [vmem:[#allocation3] sm:$0xff]
    %v43 = vld [vmem:[#allocation3 + $0x8] sm:$0xff]
    %v44 = vld [vmem:[#allocation3 + $0x10] sm:$0xff]
    %v45 = vld [vmem:[#allocation3 + $0x18] sm:$0xff]
    %v46 = vld [vmem:[#allocation3 + $0x20] sm:$0xff]
    %v47 = vld [vmem:[#allocation3 + $0x28] sm:$0xff]
    %v48 = vld [vmem:[#allocation3 + $0x30] sm:$0xff]
    %v49 = vld [vmem:[#allocation3 + $0x38] sm:$0xff]
    %v50 = vld [vmem:[#allocation3 + $0x40] sm:$0xff]
    %v51 = vld [vmem:[#allocation3 + $0x48] sm:$0xff]
    %v52 = vld [vmem:[#allocation3 + $0x50] sm:$0xff]
    %v53 = vld [vmem:[#allocation3 + $0x58] sm:$0xff]
    %v54 = vld [vmem:[#allocation3 + $0x60] sm:$0xff]
    %v55 = vld [vmem:[#allocation3 + $0x68] sm:$0xff]
    %v56 = vld [vmem:[#allocation3 + $0x70] sm:$0xff]
    %v57 = vld [vmem:[#allocation3 + $0x78] sm:$0xff]
    %v58 = vld [vmem:[%s2] sm:$0xff]
    %v59 = vld [vmem:[%s2 + $0x8] sm:$0xff]
    %v60 = vlaneseq
    %v61 = vand.u32 %v60, 127
    %v62 = vld [vmem:[%s1] sm:$0xff]
    %v63 = vld [vmem:[%s1 + $0x8] sm:$0xff]
    %v64 = vld [vmem:[%s1 + $0x10] sm:$0xff]
    %v65 = vld [vmem:[%s1 + $0x18] sm:$0xff]
    %v66 = vld [vmem:[%s1 + $0x20] sm:$0xff]
    %v67 = vld [vmem:[%s1 + $0x28] sm:$0xff]
    %v68 = vld [vmem:[%s1 + $0x30] sm:$0xff]
    %v69 = vld [vmem:[%s1 + $0x38] sm:$0xff]
    %v70 = vld [vmem:[%s1 + $0x40] sm:$0xff]
    %v71 = vld [vmem:[%s1 + $0x48] sm:$0xff]
    %v72 = vld [vmem:[%s1 + $0x50] sm:$0xff]
    %v73 = vld [vmem:[%s1 + $0x58] sm:$0xff]
    %v74 = vld [vmem:[%s1 + $0x60] sm:$0xff]
    %v75 = vld [vmem:[%s1 + $0x68] sm:$0xff]
    %v76 = vld [vmem:[%s1 + $0x70] sm:$0xff]
    %v77 = vld [vmem:[%s1 + $0x78] sm:$0xff]
    %78 = vset.pattern.permute.xlu0 0
    %79 = vperm.xlu0 %78, %v62
    %v80 = vpop.permute.xlu0 %79
    %81 = vset.pattern.permute.xlu0 0
    %82 = vperm.xlu0 %81, %v63
    %v83 = vpop.permute.xlu0 %82
    %84 = vset.pattern.permute.xlu0 0
    %85 = vperm.xlu0 %84, %v64
    %v86 = vpop.permute.xlu0 %85
    %87 = vset.pattern.permute.xlu0 0
    %88 = vperm.xlu0 %87, %v65
    %v89 = vpop.permute.xlu0 %88
    %90 = vset.pattern.permute.xlu0 0
    %91 = vperm.xlu0 %90, %v66
    %v92 = vpop.permute.xlu0 %91
    %93 = vset.pattern.permute.xlu0 0
    %94 = vperm.xlu0 %93, %v67
    %v95 = vpop.permute.xlu0 %94
    %96 = vset.pattern.permute.xlu0 0
    %97 = vperm.xlu0 %96, %v68
    %v98 = vpop.permute.xlu0 %97
    %99 = vset.pattern.permute.xlu0 0
    %100 = vperm.xlu0 %99, %v69
    %v101 = vpop.permute.xlu0 %100
    %102 = vset.pattern.permute.xlu0 0
    %103 = vperm.xlu0 %102, %v70
    %v104 = vpop.permute.xlu0 %103
    %105 = vset.pattern.permute.xlu0 0
    %106 = vperm.xlu0 %105, %v71
    %v107 = vpop.permute.xlu0 %106
    %108 = vset.pattern.permute.xlu0 0
    %109 = vperm.xlu0 %108, %v72
    %v110 = vpop.permute.xlu0 %109
    %111 = vset.pattern.permute.xlu0 0
    %112 = vperm.xlu0 %111, %v73
    %v113 = vpop.permute.xlu0 %112
    %114 = vset.pattern.permute.xlu0 0
    %115 = vperm.xlu0 %114, %v74
    %v116 = vpop.permute.xlu0 %115
    %117 = vset.pattern.permute.xlu0 0
    %118 = vperm.xlu0 %117, %v75
    %v119 = vpop.permute.xlu0 %118
    %120 = vset.pattern.permute.xlu0 0
    %121 = vperm.xlu0 %120, %v76
    %v122 = vpop.permute.xlu0 %121
    %123 = vset.pattern.permute.xlu0 0
    %124 = vperm.xlu0 %123, %v77
    %v125 = vpop.permute.xlu0 %124
    %vm126 = vcmp.eq.s32.totalorder %v61, %v80
    %vm127 = vcmp.eq.s32.totalorder %v61, %v83
    %vm128 = vcmp.eq.s32.totalorder %v61, %v86
    %vm129 = vcmp.eq.s32.totalorder %v61, %v89
    %vm130 = vcmp.eq.s32.totalorder %v61, %v92
    %vm131 = vcmp.eq.s32.totalorder %v61, %v95
    %vm132 = vcmp.eq.s32.totalorder %v61, %v98
    %vm133 = vcmp.eq.s32.totalorder %v61, %v101
    %vm134 = vcmp.eq.s32.totalorder %v61, %v104
    %vm135 = vcmp.eq.s32.totalorder %v61, %v107
    %vm136 = vcmp.eq.s32.totalorder %v61, %v110
    %vm137 = vcmp.eq.s32.totalorder %v61, %v113
    %vm138 = vcmp.eq.s32.totalorder %v61, %v116
    %vm139 = vcmp.eq.s32.totalorder %v61, %v119
    %vm140 = vcmp.eq.s32.totalorder %v61, %v122
    %vm141 = vcmp.eq.s32.totalorder %v61, %v125
    %v142 = vsel %vm126, 1, 0
    %v143 = vsel %vm127, 1, 0
    %v144 = vsel %vm128, 1, 0
    %v145 = vsel %vm129, 1, 0
    %v146 = vsel %vm130, 1, 0
    %v147 = vsel %vm131, 1, 0
    %v148 = vsel %vm132, 1, 0
    %v149 = vsel %vm133, 1, 0
    %v150 = vsel %vm134, 1, 0
    %v151 = vsel %vm135, 1, 0
    %v152 = vsel %vm136, 1, 0
    %v153 = vsel %vm137, 1, 0
    %v154 = vsel %vm138, 1, 0
    %v155 = vsel %vm139, 1, 0
    %v156 = vsel %vm140, 1, 0
    %v157 = vsel %vm141, 1, 0
    %v158 = vcvt.s32.f32 %v142
    %v159 = vcvt.s32.f32 %v143
    %v160 = vcvt.s32.f32 %v144
    %v161 = vcvt.s32.f32 %v145
    %v162 = vcvt.s32.f32 %v146
    %v163 = vcvt.s32.f32 %v147
    %v164 = vcvt.s32.f32 %v148
    %v165 = vcvt.s32.f32 %v149
    %v166 = vcvt.s32.f32 %v150
    %v167 = vcvt.s32.f32 %v151
    %v168 = vcvt.s32.f32 %v152
    %v169 = vcvt.s32.f32 %v153
    %v170 = vcvt.s32.f32 %v154
    %v171 = vcvt.s32.f32 %v155
    %v172 = vcvt.s32.f32 %v156
    %v173 = vcvt.s32.f32 %v157
    %v174 = vld [vmem:[%s3] sm:$0xf]
    %vm175 = vcmask 31744
    %v177 = vsel %vm175, %v158, 0
    %v180 = vsel %vm175, %v159, 0
    %v183 = vsel %vm175, %v160, 0
    %v186 = vsel %vm175, %v161, 0
    %v189 = vsel %vm175, %v162, 0
    %v192 = vsel %vm175, %v163, 0
    %v195 = vsel %vm175, %v164, 0
    %v198 = vsel %vm175, %v165, 0
    %v201 = vsel %vm175, %v166, 0
    %v204 = vsel %vm175, %v167, 0
    %v207 = vsel %vm175, %v168, 0
    %v210 = vsel %vm175, %v169, 0
    %v213 = vsel %vm175, %v170, 0
    %v216 = vsel %vm175, %v171, 0
    %v219 = vsel %vm175, %v172, 0
    %v222 = vsel %vm175, %v173, 0
    %vm224 = vcmask 1043456
    %v226 = vsel %vm224, %v174, 0
    %228 = vmatprep.subr.mxu0 0.0
    %229 = vmatpush1.msra.mxu0 %v226
    %230 = vmatprep.subr.mxu0 0.0
    %231 = vmatpush1.msra.mxu0 0.0
    %232 = vmatprep.subr.mxu0 0.0
    %233 = vmatpush1.msra.mxu0 0.0
    %234 = vmatprep.subr.mxu0 0.0
    %235 = vmatpush1.msra.mxu0 0.0
    %236 = vmatprep.subr.mxu0 0.0
    %237 = vmatpush1.msra.mxu0 0.0
    %238 = vmatprep.subr.mxu0 0.0
    %239 = vmatpush1.msra.mxu0 0.0
    %240 = vmatprep.subr.mxu0 0.0
    %241 = vmatpush1.msra.mxu0 0.0
    %242 = vmatprep.subr.mxu0 0.0
    %243 = vmatpush1.msra.mxu0 0.0
    %244 = vmatprep.subr.mxu0 0.0
    %245 = vmatpush1.msra.mxu0 0.0
    %246 = vmatprep.subr.mxu0 0.0
    %247 = vmatpush1.msra.mxu0 0.0
    %248 = vmatprep.subr.mxu0 0.0
    %249 = vmatpush1.msra.mxu0 0.0
    %250 = vmatprep.subr.mxu0 0.0
    %251 = vmatpush1.msra.mxu0 0.0
    %252 = vmatprep.subr.mxu0 0.0
    %253 = vmatpush1.msra.mxu0 0.0
    %254 = vmatprep.subr.mxu0 0.0
    %255 = vmatpush1.msra.mxu0 0.0
    %256 = vmatprep.subr.mxu0 0.0
    %257 = vmatpush1.msra.mxu0 0.0
    %258 = vmatprep.subr.mxu0 0.0
    %259 = vmatpush1.msra.mxu0 0.0
    %260 = vmatprep.subr.mxu0 0.0
    %261 = vmatpush1.msra.mxu0 0.0
    %262 = vmatprep.subr.mxu0 0.0
    %263 = vmatpush1.msra.mxu0 0.0
    %264 = vmatprep.subr.mxu0 0.0
    %265 = vmatpush1.msra.mxu0 0.0
    %266 = vmatprep.subr.mxu0 0.0
    %267 = vmatpush1.msra.mxu0 0.0
    %268 = vmatprep.subr.mxu0 0.0
    %269 = vmatpush1.msra.mxu0 0.0
    %270 = vmatprep.subr.mxu0 0.0
    %271 = vmatpush1.msra.mxu0 0.0
    %272 = vmatprep.subr.mxu0 0.0
    %273 = vmatpush1.msra.mxu0 0.0
    %274 = vmatprep.subr.mxu0 0.0
    %275 = vmatpush1.msra.mxu0 0.0
    %276 = vmatprep.subr.mxu0 0.0
    %277 = vmatpush1.msra.mxu0 0.0
    %278 = vmatprep.subr.mxu0 0.0
    %279 = vmatpush1.msra.mxu0 0.0
    %280 = vmatprep.subr.mxu0 0.0
    %281 = vmatpush1.msra.mxu0 0.0
    %282 = vmatprep.subr.mxu0 0.0
    %283 = vmatpush1.msra.mxu0 0.0
    %284 = vmatprep.subr.mxu0 0.0
    %285 = vmatpush1.msra.mxu0 0.0
    %286 = vmatprep.subr.mxu0 0.0
    %287 = vmatpush1.msra.mxu0 0.0
    %288 = vmatprep.subr.mxu0 0.0
    %289 = vmatpush1.msra.mxu0 0.0
    %290 = vmatprep.subr.mxu0 0.0
    %291 = vmatpush1.msra.mxu0 0.0
    %292 = vmatprep.mubr.f32.mxu0 0.0
    %293 = vmatmul.mubr.f32.gmra.mrb[0].mxu0 %v177
    %v294 = vpop.f32.mrb[0].mxu0
    %v295 = vadd.f32 0.0, %v294
    %v296 = vpop.f32.mrb[0].mxu0
    %297 = vmatprep.mubr.f32.mxu0 0.0
    %298 = vmatmul.mubr.f32.gmra.mrb[0].mxu0 %v180
    %v299 = vpop.f32.mrb[0].mxu0
    %v300 = vadd.f32 0.0, %v299
    %v301 = vpop.f32.mrb[0].mxu0
    %302 = vmatprep.mubr.f32.mxu0 0.0
    %303 = vmatmul.mubr.f32.gmra.mrb[0].mxu0 %v183
    %v304 = vpop.f32.mrb[0].mxu0
    %v305 = vadd.f32 0.0, %v304
    %v306 = vpop.f32.mrb[0].mxu0
    %307 = vmatprep.mubr.f32.mxu0 0.0
    %308 = vmatmul.mubr.f32.gmra.mrb[0].mxu0 %v186
    %v309 = vpop.f32.mrb[0].mxu0
    %v310 = vadd.f32 0.0, %v309
    %v311 = vpop.f32.mrb[0].mxu0
    %312 = vmatprep.mubr.f32.mxu0 0.0
    %313 = vmatmul.mubr.f32.gmra.mrb[0].mxu0 %v189
    %v314 = vpop.f32.mrb[0].mxu0
    %v315 = vadd.f32 0.0, %v314
    %v316 = vpop.f32.mrb[0].mxu0
    %317 = vmatprep.mubr.f32.mxu0 0.0
    %318 = vmatmul.mubr.f32.gmra.mrb[0].mxu0 %v192
    %v319 = vpop.f32.mrb[0].mxu0
    %v320 = vadd.f32 0.0, %v319
    %v321 = vpop.f32.mrb[0].mxu0
    %322 = vmatprep.mubr.f32.mxu0 0.0
    %323 = vmatmul.mubr.f32.gmra.mrb[0].mxu0 %v195
    %v324 = vpop.f32.mrb[0].mxu0
    %v325 = vadd.f32 0.0, %v324
    %v326 = vpop.f32.mrb[0].mxu0
    %327 = vmatprep.mubr.f32.mxu0 0.0
    %328 = vmatmul.mubr.f32.gmra.mrb[0].mxu0 %v198
    %v329 = vpop.f32.mrb[0].mxu0
    %v330 = vadd.f32 0.0, %v329
    %v331 = vpop.f32.mrb[0].mxu0
    %332 = vmatprep.mubr.f32.mxu0 0.0
    %333 = vmatmul.mubr.f32.gmra.mrb[0].mxu0 %v201
    %v334 = vpop.f32.mrb[0].mxu0
    %v335 = vadd.f32 0.0, %v334
    %v336 = vpop.f32.mrb[0].mxu0
    %337 = vmatprep.mubr.f32.mxu0 0.0
    %338 = vmatmul.mubr.f32.gmra.mrb[0].mxu0 %v204
    %v339 = vpop.f32.mrb[0].mxu0
    %v340 = vadd.f32 0.0, %v339
    %v341 = vpop.f32.mrb[0].mxu0
    %342 = vmatprep.mubr.f32.mxu0 0.0
    %343 = vmatmul.mubr.f32.gmra.mrb[0].mxu0 %v207
    %v344 = vpop.f32.mrb[0].mxu0
    %v345 = vadd.f32 0.0, %v344
    %v346 = vpop.f32.mrb[0].mxu0
    %347 = vmatprep.mubr.f32.mxu0 0.0
    %348 = vmatmul.mubr.f32.gmra.mrb[0].mxu0 %v210
    %v349 = vpop.f32.mrb[0].mxu0
    %v350 = vadd.f32 0.0, %v349
    %v351 = vpop.f32.mrb[0].mxu0
    %352 = vmatprep.mubr.f32.mxu0 0.0
    %353 = vmatmul.mubr.f32.gmra.mrb[0].mxu0 %v213
    %v354 = vpop.f32.mrb[0].mxu0
    %v355 = vadd.f32 0.0, %v354
    %v356 = vpop.f32.mrb[0].mxu0
    %357 = vmatprep.mubr.f32.mxu0 0.0
    %358 = vmatmul.mubr.f32.gmra.mrb[0].mxu0 %v216
    %v359 = vpop.f32.mrb[0].mxu0
    %v360 = vadd.f32 0.0, %v359
    %v361 = vpop.f32.mrb[0].mxu0
    %362 = vmatprep.mubr.f32.mxu0 0.0
    %363 = vmatmul.mubr.f32.gmra.mrb[0].mxu0 %v219
    %v364 = vpop.f32.mrb[0].mxu0
    %v365 = vadd.f32 0.0, %v364
    %v366 = vpop.f32.mrb[0].mxu0
    %367 = vmatprep.mubr.f32.mxu0 0.0
    %368 = vmatmul.mubr.f32.gmra.mrb[0].mxu0 %v222
    %v369 = vpop.f32.mrb[0].mxu0
    %v370 = vadd.f32 0.0, %v369
    %v371 = vpop.f32.mrb[0].mxu0
    %372 = vdwg.mxu0
    %vm373 = vcmask 130048
    %v375 = vsel %vm373, %v42, 0
    %v378 = vsel %vm373, %v43, 0
    %v381 = vsel %vm373, %v44, 0
    %v384 = vsel %vm373, %v45, 0
    %v387 = vsel %vm373, %v46, 0
    %v390 = vsel %vm373, %v47, 0
    %v393 = vsel %vm373, %v48, 0
    %v396 = vsel %vm373, %v49, 0
    %v399 = vsel %vm373, %v50, 0
    %v402 = vsel %vm373, %v51, 0
    %v405 = vsel %vm373, %v52, 0
    %v408 = vsel %vm373, %v53, 0
    %v411 = vsel %vm373, %v54, 0
    %v414 = vsel %vm373, %v55, 0
    %v417 = vsel %vm373, %v56, 0
    %v420 = vsel %vm373, %v57, 0
    %422 = vmatprep.subr.mxu0 0.0
    %423 = vmatpush1.msra.mxu0 %v58
    %424 = vmatprep.subr.mxu0 0.0
    %425 = vmatpush1.msra.mxu0 %v59
    %426 = vmatprep.subr.mxu0 0.0
    %427 = vmatpush1.msra.mxu0 0.0
    %428 = vmatprep.subr.mxu0 0.0
    %429 = vmatpush1.msra.mxu0 0.0
    %430 = vmatprep.subr.mxu0 0.0
    %431 = vmatpush1.msra.mxu0 0.0
    %432 = vmatprep.subr.mxu0 0.0
    %433 = vmatpush1.msra.mxu0 0.0
    %434 = vmatprep.subr.mxu0 0.0
    %435 = vmatpush1.msra.mxu0 0.0
    %436 = vmatprep.subr.mxu0 0.0
    %437 = vmatpush1.msra.mxu0 0.0
    %438 = vmatprep.subr.mxu0 0.0
    %439 = vmatpush1.msra.mxu0 0.0
    %440 = vmatprep.subr.mxu0 0.0
    %441 = vmatpush1.msra.mxu0 0.0
    %442 = vmatprep.subr.mxu0 0.0
    %443 = vmatpush1.msra.mxu0 0.0
    %444 = vmatprep.subr.mxu0 0.0
    %445 = vmatpush1.msra.mxu0 0.0
    %446 = vmatprep.subr.mxu0 0.0
    %447 = vmatpush1.msra.mxu0 0.0
    %448 = vmatprep.subr.mxu0 0.0
    %449 = vmatpush1.msra.mxu0 0.0
    %450 = vmatprep.subr.mxu0 0.0
    %451 = vmatpush1.msra.mxu0 0.0
    %452 = vmatprep.subr.mxu0 0.0
    %453 = vmatpush1.msra.mxu0 0.0
    %454 = vmatprep.subr.mxu0 0.0
    %455 = vmatpush1.msra.mxu0 0.0
    %456 = vmatprep.subr.mxu0 0.0
    %457 = vmatpush1.msra.mxu0 0.0
    %458 = vmatprep.subr.mxu0 0.0
    %459 = vmatpush1.msra.mxu0 0.0
    %460 = vmatprep.subr.mxu0 0.0
    %461 = vmatpush1.msra.mxu0 0.0
    %462 = vmatprep.subr.mxu0 0.0
    %463 = vmatpush1.msra.mxu0 0.0
    %464 = vmatprep.subr.mxu0 0.0
    %465 = vmatpush1.msra.mxu0 0.0
    %466 = vmatprep.subr.mxu0 0.0
    %467 = vmatpush1.msra.mxu0 0.0
    %468 = vmatprep.subr.mxu0 0.0
    %469 = vmatpush1.msra.mxu0 0.0
    %470 = vmatprep.subr.mxu0 0.0
    %471 = vmatpush1.msra.mxu0 0.0
    %472 = vmatprep.subr.mxu0 0.0
    %473 = vmatpush1.msra.mxu0 0.0
    %474 = vmatprep.subr.mxu0 0.0
    %475 = vmatpush1.msra.mxu0 0.0
    %476 = vmatprep.subr.mxu0 0.0
    %477 = vmatpush1.msra.mxu0 0.0
    %478 = vmatprep.subr.mxu0 0.0
    %479 = vmatpush1.msra.mxu0 0.0
    %480 = vmatprep.subr.mxu0 0.0
    %481 = vmatpush1.msra.mxu0 0.0
    %482 = vmatprep.subr.mxu0 0.0
    %483 = vmatpush1.msra.mxu0 0.0
    %484 = vmatprep.subr.mxu0 0.0
    %485 = vmatpush1.msra.mxu0 0.0
    %486 = vmatprep.mubr.f32.mxu0 0.0
    %487 = vmatmul.mubr.f32.gmra.mrb[0].mxu0 %v375
    %v488 = vpop.f32.mrb[0].mxu0
    %v489 = vadd.f32 %v295, %v488
    %v490 = vpop.f32.mrb[0].mxu0
    %491 = vmatprep.mubr.f32.mxu0 0.0
    %492 = vmatmul.mubr.f32.gmra.mrb[0].mxu0 %v378
    %v493 = vpop.f32.mrb[0].mxu0
    %v494 = vadd.f32 %v300, %v493
    %v495 = vpop.f32.mrb[0].mxu0
    %496 = vmatprep.mubr.f32.mxu0 0.0
    %497 = vmatmul.mubr.f32.gmra.mrb[0].mxu0 %v381
    %v498 = vpop.f32.mrb[0].mxu0
    %v499 = vadd.f32 %v305, %v498
    %v500 = vpop.f32.mrb[0].mxu0
    %501 = vmatprep.mubr.f32.mxu0 0.0
    %502 = vmatmul.mubr.f32.gmra.mrb[0].mxu0 %v384
    %v503 = vpop.f32.mrb[0].mxu0
    %v504 = vadd.f32 %v310, %v503
    %v505 = vpop.f32.mrb[0].mxu0
    %506 = vmatprep.mubr.f32.mxu0 0.0
    %507 = vmatmul.mubr.f32.gmra.mrb[0].mxu0 %v387
    %v508 = vpop.f32.mrb[0].mxu0
    %v509 = vadd.f32 %v315, %v508
    %v510 = vpop.f32.mrb[0].mxu0
    %511 = vmatprep.mubr.f32.mxu0 0.0
    %512 = vmatmul.mubr.f32.gmra.mrb[0].mxu0 %v390
    %v513 = vpop.f32.mrb[0].mxu0
    %v514 = vadd.f32 %v320, %v513
    %v515 = vpop.f32.mrb[0].mxu0
    %516 = vmatprep.mubr.f32.mxu0 0.0
    %517 = vmatmul.mubr.f32.gmra.mrb[0].mxu0 %v393
    %v518 = vpop.f32.mrb[0].mxu0
    %v519 = vadd.f32 %v325, %v518
    %v520 = vpop.f32.mrb[0].mxu0
    %521 = vmatprep.mubr.f32.mxu0 0.0
    %522 = vmatmul.mubr.f32.gmra.mrb[0].mxu0 %v396
    %v523 = vpop.f32.mrb[0].mxu0
    %v524 = vadd.f32 %v330, %v523
    %v525 = vpop.f32.mrb[0].mxu0
    %526 = vmatprep.mubr.f32.mxu0 0.0
    %527 = vmatmul.mubr.f32.gmra.mrb[0].mxu0 %v399
    %v528 = vpop.f32.mrb[0].mxu0
    %v529 = vadd.f32 %v335, %v528
    %v530 = vpop.f32.mrb[0].mxu0
    %531 = vmatprep.mubr.f32.mxu0 0.0
    %532 = vmatmul.mubr.f32.gmra.mrb[0].mxu0 %v402
    %v533 = vpop.f32.mrb[0].mxu0
    %v534 = vadd.f32 %v340, %v533
    %v535 = vpop.f32.mrb[0].mxu0
    %536 = vmatprep.mubr.f32.mxu0 0.0
    %537 = vmatmul.mubr.f32.gmra.mrb[0].mxu0 %v405
    %v538 = vpop.f32.mrb[0].mxu0
    %v539 = vadd.f32 %v345, %v538
    %v540 = vpop.f32.mrb[0].mxu0
    %541 = vmatprep.mubr.f32.mxu0 0.0
    %542 = vmatmul.mubr.f32.gmra.mrb[0].mxu0 %v408
    %v543 = vpop.f32.mrb[0].mxu0
    %v544 = vadd.f32 %v350, %v543
    %v545 = vpop.f32.mrb[0].mxu0
    %546 = vmatprep.mubr.f32.mxu0 0.0
    %547 = vmatmul.mubr.f32.gmra.mrb[0].mxu0 %v411
    %v548 = vpop.f32.mrb[0].mxu0
    %v549 = vadd.f32 %v355, %v548
    %v550 = vpop.f32.mrb[0].mxu0
    %551 = vmatprep.mubr.f32.mxu0 0.0
    %552 = vmatmul.mubr.f32.gmra.mrb[0].mxu0 %v414
    %v553 = vpop.f32.mrb[0].mxu0
    %v554 = vadd.f32 %v360, %v553
    %v555 = vpop.f32.mrb[0].mxu0
    %556 = vmatprep.mubr.f32.mxu0 0.0
    %557 = vmatmul.mubr.f32.gmra.mrb[0].mxu0 %v417
    %v558 = vpop.f32.mrb[0].mxu0
    %v559 = vadd.f32 %v365, %v558
    %v560 = vpop.f32.mrb[0].mxu0
    %561 = vmatprep.mubr.f32.mxu0 0.0
    %562 = vmatmul.mubr.f32.gmra.mrb[0].mxu0 %v420
    %v563 = vpop.f32.mrb[0].mxu0
    %v564 = vadd.f32 %v370, %v563
    %v565 = vpop.f32.mrb[0].mxu0
    %566 = vdwg.mxu0
    %v567 = vld [vmem:[%s4] sm:$0x1]
    %v569 = vlaneseq
    %v570 = vshrl.u32 %v569, 7
    %v571 = vsub.s32 0, %v570
    %v572 = vrot.slane %v567, %v571
    %v574 = vadd.f32 %v489, %v572
    %v575 = vadd.f32 %v494, %v572
    %v576 = vadd.f32 %v499, %v572
    %v577 = vadd.f32 %v504, %v572
    %v578 = vadd.f32 %v509, %v572
    %v579 = vadd.f32 %v514, %v572
    %v580 = vadd.f32 %v519, %v572
    %v581 = vadd.f32 %v524, %v572
    %v582 = vadd.f32 %v529, %v572
    %v583 = vadd.f32 %v534, %v572
    %v584 = vadd.f32 %v539, %v572
    %v585 = vadd.f32 %v544, %v572
    %v586 = vadd.f32 %v549, %v572
    %v587 = vadd.f32 %v554, %v572
    %v588 = vadd.f32 %v559, %v572
    %v589 = vadd.f32 %v564, %v572
    %v590 = vmax.f32 %v574, 0.0
    %v591 = vmax.f32 %v575, 0.0
    %v592 = vmax.f32 %v576, 0.0
    %v593 = vmax.f32 %v577, 0.0
    %v594 = vmax.f32 %v578, 0.0
    %v595 = vmax.f32 %v579, 0.0
    %v596 = vmax.f32 %v580, 0.0
    %v597 = vmax.f32 %v581, 0.0
    %v598 = vmax.f32 %v582, 0.0
    %v599 = vmax.f32 %v583, 0.0
    %v600 = vmax.f32 %v584, 0.0
    %v601 = vmax.f32 %v585, 0.0
    %v602 = vmax.f32 %v586, 0.0
    %v603 = vmax.f32 %v587, 0.0
    %v604 = vmax.f32 %v588, 0.0
    %v605 = vmax.f32 %v589, 0.0
    %v606 = vld [vmem:[%s5] sm:$0x1]
    %s607 = sld [smem:[#allocation2]]
    %v608 = vstv %s607
    %vm609 = vcmask 261120
    %v611 = vsel %vm609, %v606, 0
    %v614 = vsel %vm609, %v590, 0
    %v617 = vsel %vm609, %v591, 0
    %v620 = vsel %vm609, %v592, 0
    %v623 = vsel %vm609, %v593, 0
    %v626 = vsel %vm609, %v594, 0
    %v629 = vsel %vm609, %v595, 0
    %v632 = vsel %vm609, %v596, 0
    %v635 = vsel %vm609, %v597, 0
    %v638 = vsel %vm609, %v598, 0
    %v641 = vsel %vm609, %v599, 0
    %v644 = vsel %vm609, %v600, 0
    %v647 = vsel %vm609, %v601, 0
    %v650 = vsel %vm609, %v602, 0
    %v653 = vsel %vm609, %v603, 0
    %v656 = vsel %vm609, %v604, 0
    %v659 = vsel %vm609, %v605, 0
    %661 = vmatprep.subr.mxu0 0.0
    %662 = vmatpush1.xpose.msra.mxu0 %v614
    %663 = vmatprep.subr.mxu0 0.0
    %664 = vmatpush1.xpose.msra.mxu0 %v617
    %665 = vmatprep.subr.mxu0 0.0
    %666 = vmatpush1.xpose.msra.mxu0 %v620
    %667 = vmatprep.subr.mxu0 0.0
    %668 = vmatpush1.xpose.msra.mxu0 %v623
    %669 = vmatprep.subr.mxu0 0.0
    %670 = vmatpush1.xpose.msra.mxu0 %v626
    %671 = vmatprep.subr.mxu0 0.0
    %672 = vmatpush1.xpose.msra.mxu0 %v629
    %673 = vmatprep.subr.mxu0 0.0
    %674 = vmatpush1.xpose.msra.mxu0 %v632
    %675 = vmatprep.subr.mxu0 0.0
    %676 = vmatpush1.xpose.msra.mxu0 %v635
    %677 = vmatprep.subr.mxu0 0.0
    %678 = vmatpush1.xpose.msra.mxu0 %v638
    %679 = vmatprep.subr.mxu0 0.0
    %680 = vmatpush1.xpose.msra.mxu0 %v641
    %681 = vmatprep.subr.mxu0 0.0
    %682 = vmatpush1.xpose.msra.mxu0 %v644
    %683 = vmatprep.subr.mxu0 0.0
    %684 = vmatpush1.xpose.msra.mxu0 %v647
    %685 = vmatprep.subr.mxu0 0.0
    %686 = vmatpush1.xpose.msra.mxu0 %v650
    %687 = vmatprep.subr.mxu0 0.0
    %688 = vmatpush1.xpose.msra.mxu0 %v653
    %689 = vmatprep.subr.mxu0 0.0
    %690 = vmatpush1.xpose.msra.mxu0 %v656
    %691 = vmatprep.subr.mxu0 0.0
    %692 = vmatpush1.xpose.msra.mxu0 %v659
    %693 = vmatprep.subr.mxu0 0.0
    %694 = vmatpush1.xpose.msra.mxu0 0.0
    %695 = vmatprep.subr.mxu0 0.0
    %696 = vmatpush1.xpose.msra.mxu0 0.0
    %697 = vmatprep.subr.mxu0 0.0
    %698 = vmatpush1.xpose.msra.mxu0 0.0
    %699 = vmatprep.subr.mxu0 0.0
    %700 = vmatpush1.xpose.msra.mxu0 0.0
    %701 = vmatprep.subr.mxu0 0.0
    %702 = vmatpush1.xpose.msra.mxu0 0.0
    %703 = vmatprep.subr.mxu0 0.0
    %704 = vmatpush1.xpose.msra.mxu0 0.0
    %705 = vmatprep.subr.mxu0 0.0
    %706 = vmatpush1.xpose.msra.mxu0 0.0
    %707 = vmatprep.subr.mxu0 0.0
    %708 = vmatpush1.xpose.msra.mxu0 0.0
    %709 = vmatprep.subr.mxu0 0.0
    %710 = vmatpush1.xpose.msra.mxu0 0.0
    %711 = vmatprep.subr.mxu0 0.0
    %712 = vmatpush1.xpose.msra.mxu0 0.0
    %713 = vmatprep.subr.mxu0 0.0
    %714 = vmatpush1.xpose.msra.mxu0 0.0
    %715 = vmatprep.subr.mxu0 0.0
    %716 = vmatpush1.xpose.msra.mxu0 0.0
    %717 = vmatprep.subr.mxu0 0.0
    %718 = vmatpush1.xpose.msra.mxu0 0.0
    %719 = vmatprep.subr.mxu0 0.0
    %720 = vmatpush1.xpose.msra.mxu0 0.0
    %721 = vmatprep.subr.mxu0 0.0
    %722 = vmatpush1.xpose.msra.mxu0 0.0
    %723 = vmatprep.subr.mxu0 0.0
    %724 = vmatpush1.xpose.msra.mxu0 0.0
    %725 = vmatprep.mubr.f32.mxu0 0.0
    %726 = vmatmul.mubr.f32.gmra.mrb[0].mxu0 %v611
    %v727 = vpop.f32.mrb[0].mxu0
    %v728 = vadd.f32 %v608, %v727
    %v729 = vpop.f32.mrb[0].mxu0
    %730 = vdwg.mxu0
    %731 = vst [vmem:[#allocation6] sm:$0x1] %v728
    // Predicated region
    $region34: #{tpu_custom_call.1} parent=1 // pred_check
      _
    $region35: #{tpu_custom_call.1} parent=1 // pred_check_branch
      %733 = sbr.rel (0) target = $region37
    $region36: #{tpu_custom_call.1} parent=1 // pred_region
      %s735 = ssub.s32 16, 16
      %736 = vsyncadd [#allocation5], %s735
      %s738 = sshll.u32 [#allocation6], 4
      %s739 = int_to_ptr.vmem [resolvable:$true] %s738
      %741 = dma.vmem_to_hbm [thread:$0]  %s739, 16, %s7, [#allocation5]
    $region37: #{tpu_custom_call.1} parent=1 // pred_fallthru
      _
    // Predicated region
    $region38: #{tpu_custom_call.1} parent=1 // pred_check
      _
    $region39: #{tpu_custom_call.1} parent=1 // pred_check_branch
      %743 = sbr.rel (0) target = $region41
    $region40: #{tpu_custom_call.1} parent=1 // pred_region
      %744 = dma.done [#allocation5], 16
    $region41: #{tpu_custom_call.1} parent=1 // pred_fallthru
      _
    %745 = vsyncpa [#allocation4], 1
    %746 = vsyncpa [#allocation5], 1

</llo_original>
